<compile_context>
chip_gen: v5e
topology: v5e:2x2
jax: 0.10.0
libtpu: 0.0.40
codegen_flags: <defaults>
</compile_context>

<pallas_src>
import math

import jax
import jax.numpy as jnp
from jax.experimental import pallas as pl
from jax.experimental.pallas import tpu as pltpu

_MIN_BYTES_FOR_CHUNKING = 8 * 1024 * 1024  # below this, one DMA is cheapest
_MAX_CHUNKS = 4                            # outstanding DMAs for big copies


def _make_dma_copy_kernel(chunk_sizes):
    """HBM->HBM copy: issue one DMA per static leading-dim chunk, then wait all."""
    def kernel(x_hbm, o_hbm, sems):
        copies = []
        start = 0
        for c, size in enumerate(chunk_sizes):
            cp = pltpu.make_async_copy(
                x_hbm.at[pl.ds(start, size)],
                o_hbm.at[pl.ds(start, size)],
                sems.at[c],
            )
            cp.start()          # all chunk DMAs outstanding simultaneously
            copies.append(cp)
            start += size
        for cp in copies:
            cp.wait()
    return kernel


def flatten(x: jax.Array) -> jax.Array:
    """Pallas equivalent of torch Flatten: x.view(-1, prod(x.shape[1:]))."""
    n = x.shape[0]
    f = math.prod(x.shape[1:]) if x.ndim > 1 else 1
    total = n * f
    itemsize = jnp.dtype(x.dtype).itemsize

    # Static leading-dim chunking: 1 DMA for small tensors, up to 4
    # outstanding DMAs for large ones so the DMA engines saturate HBM.
    if total * itemsize >= _MIN_BYTES_FOR_CHUNKING and n >= 2:
        num_chunks = min(_MAX_CHUNKS, n)
    else:
        num_chunks = 1
    base, rem = divmod(n, num_chunks)
    chunk_sizes = tuple(base + (1 if c < rem else 0) for c in range(num_chunks))

    copied = pl.pallas_call(
        _make_dma_copy_kernel(chunk_sizes),
        out_shape=jax.ShapeDtypeStruct(x.shape, x.dtype),
        in_specs=[pl.BlockSpec(memory_space=pl.ANY)],   # raw HBM ref, no auto-DMA
        out_specs=pl.BlockSpec(memory_space=pl.ANY),
        scratch_shapes=[pltpu.SemaphoreType.DMA((num_chunks,))],
        cost_estimate=pl.CostEstimate(
            flops=0,
            transcendentals=0,
            bytes_accessed=2 * total * itemsize,
        ),
    )(x)

    # Row-major reshape to (n, f): metadata-only (bitcast) on contiguous data,
    # same semantics as torch .view on a contiguous input.
    return jnp.reshape(copied, (n, f))


if __name__ == "__main__":
    key = jax.random.PRNGKey(0)
    # Small NCHW input consistent with the module's usage downstream of convs.
    x = jax.random.normal(key, (2, 4, 16, 16), dtype=jnp.float32)

    y = flatten(x)
    jax.block_until_ready(y)

    # Reference check against plain JAX reshape (same semantics as torch .view).
    y_ref = jnp.reshape(x, (x.shape[0], -1))
    assert y.shape == (2, 4 * 16 * 16), y.shape
    assert y.dtype == x.dtype
    assert bool(jnp.array_equal(y, y_ref))

    print("KERNEL_OK")
</pallas_src>

<mosaic_0001>
module attributes {stable_mosaic.version = 11 : i64} {
  func.func @kernel(%arg0: memref<2x4x16x16xf32, #tpu.memory_space<any>>, %arg1: memref<2x4x16x16xf32, #tpu.memory_space<any>>, %arg2: memref<1x!tpu.dma_semaphore, #tpu.memory_space<semaphore_mem>>) attributes {dimension_semantics = [], scalar_prefetch = 0 : i64, scratch_operands = 1 : i64, tpu.core_type = #tpu.core_type<tc>} {
    %c0_i32 = arith.constant 0 : i32
    %c0_i32_0 = arith.constant 0 : i32
    %c0_i32_1 = arith.constant 0 : i32
    %c0_i32_2 = arith.constant 0 : i32
    %c0_i32_3 = arith.constant 0 : i32
    %0 = tpu.memref_slice %arg0[%c0_i32_0, %c0_i32_1, %c0_i32_2, %c0_i32_3] : memref<2x4x16x16xf32, #tpu.memory_space<any>> -> memref<2x4x16x16xf32, #tpu.memory_space<any>>
    %c0_i32_4 = arith.constant 0 : i32
    %c0_i32_5 = arith.constant 0 : i32
    %c0_i32_6 = arith.constant 0 : i32
    %c0_i32_7 = arith.constant 0 : i32
    %1 = tpu.memref_slice %arg1[%c0_i32_4, %c0_i32_5, %c0_i32_6, %c0_i32_7] : memref<2x4x16x16xf32, #tpu.memory_space<any>> -> memref<2x4x16x16xf32, #tpu.memory_space<any>>
    %2 = tpu.memref_slice %arg2[%c0_i32] : memref<1x!tpu.dma_semaphore, #tpu.memory_space<semaphore_mem>> -> memref<1x!tpu.dma_semaphore, #tpu.memory_space<semaphore_mem>>
    %3 = tpu.memref_squeeze %2 : memref<1x!tpu.dma_semaphore, #tpu.memory_space<semaphore_mem>> -> memref<!tpu.dma_semaphore, #tpu.memory_space<semaphore_mem>>
    tpu.enqueue_dma source(%0 : memref<2x4x16x16xf32, #tpu.memory_space<any>>) target(%1 : memref<2x4x16x16xf32, #tpu.memory_space<any>>) target_semaphore(%3 : memref<!tpu.dma_semaphore, #tpu.memory_space<semaphore_mem>>)
    %c0_i32_8 = arith.constant 0 : i32
    %c0_i32_9 = arith.constant 0 : i32
    %c0_i32_10 = arith.constant 0 : i32
    %c0_i32_11 = arith.constant 0 : i32
    %c0_i32_12 = arith.constant 0 : i32
    %4 = tpu.memref_slice %arg0[%c0_i32_9, %c0_i32_10, %c0_i32_11, %c0_i32_12] : memref<2x4x16x16xf32, #tpu.memory_space<any>> -> memref<2x4x16x16xf32, #tpu.memory_space<any>>
    %c0_i32_13 = arith.constant 0 : i32
    %c0_i32_14 = arith.constant 0 : i32
    %c0_i32_15 = arith.constant 0 : i32
    %c0_i32_16 = arith.constant 0 : i32
    %5 = tpu.memref_slice %arg1[%c0_i32_13, %c0_i32_14, %c0_i32_15, %c0_i32_16] : memref<2x4x16x16xf32, #tpu.memory_space<any>> -> memref<2x4x16x16xf32, #tpu.memory_space<any>>
    %6 = tpu.memref_slice %arg2[%c0_i32_8] : memref<1x!tpu.dma_semaphore, #tpu.memory_space<semaphore_mem>> -> memref<1x!tpu.dma_semaphore, #tpu.memory_space<semaphore_mem>>
    %7 = tpu.memref_squeeze %6 : memref<1x!tpu.dma_semaphore, #tpu.memory_space<semaphore_mem>> -> memref<!tpu.dma_semaphore, #tpu.memory_space<semaphore_mem>>
    tpu.wait_dma2 semaphore(%7 : memref<!tpu.dma_semaphore, #tpu.memory_space<semaphore_mem>>) src(%4 : memref<2x4x16x16xf32, #tpu.memory_space<any>>) dst(%5 : memref<2x4x16x16xf32, #tpu.memory_space<any>>)
    return
  }
}

</mosaic_0001>

<llo_original>
// kernel: tpu_custom_call.1
$region0: #{tpu_custom_call.1}
  #allocation0 [shape = 'u32[]', space=smem, size = 0x4, offset = 0x4, fixed_abs, tag = 'smem constant byte address 0x4 - core index']
  #allocation1 [shape = 'u32[72,128]{1,0:T(1,128)}', space=vmem, size = 0x9000, scoped, tag = 'internal scratch']
  #allocation2 [shape = 's32[1]{0}', space=sflag, size = 0x4, scoped, tag = 'scratch operand']
  #allocation3 [shape = 's32[]', space=sflag, size = 0x4, offset = 0, fixed_abs, tag = 'sflag constant byte address 0x0 - dummy sync flag']
  #allocation4 [shape = 'u32[0]{0}', space=smem, size = 0, offset = 0, fixed_abs, tag = 'smem constant byte address 0x0 - null']
  %s0 = inlined_call_operand.hbm [shape: f32[2,4,16,16], index: 0, kind: input, shape index: {}]
  %s1 = inlined_call_operand.hbm [shape: f32[2,4,16,16], index: 1, kind: output, shape index: {}]
  %s2 = sld [smem:[#allocation0]]
  $region2: #{tpu_custom_call.1} parent=0
    _
  %s4 = ssub.s32 1, %s2
  %s5 = scalar_select 0, %s4, %s2
  %s7 = sshll.u32 1, 14
  %s8 = sxor.u32 4294967295, %s7
  %s10 = sshll.u32 %s0, 4
  %s11 = int_to_ptr.hbm [resolvable:$true] %s10
  %s12 = sshll.u32 %s1, 4
  %s13 = int_to_ptr.hbm [resolvable:$true] %s12
  %16 = dma.general %s11, 2048, %s13, [#allocation2], [#allocation3], [#allocation4], 0, 0
  %s17 = smul.u32 2, 4
  %s18 = smul.u32 %s17, 16
  %s19 = smul.u32 %s18, 1
  %s20 = sshll.u32 %s19, 4
  %21 = dma.done [#allocation2], %s20
  %22 = vsyncmov [#allocation2]
  %s23 = vpop.sfrf %22
  %p24 = scmp.eq.s32.totalorder %s23, 0
  %p25 = pneg %p24
  %27 = shalt.err (%p25)

</llo_original>
